<compile_context>
chip_gen: v7x
topology: tpu7x:2x2x1
jax: 0.10.0
libtpu: 0.0.40
codegen_flags: <defaults>
</compile_context>

<pallas_src>
import functools
import math

import jax
import jax.numpy as jnp
from jax.experimental import pallas as pl
from jax.experimental.pallas import tpu as pltpu


ACT_DTYPE = jnp.bfloat16


# --------------------- generation-aware tuning knobs -------------------------

def _device_kind():
    try:
        return jax.devices()[0].device_kind.lower()
    except Exception:
        return ""


_KIND = _device_kind()
_IS_V5 = "v5" in _KIND
_IS_V6 = "v6" in _KIND
_IS_V7 = ("v7" in _KIND) or ("7x" in _KIND)


def _default_vmem_limit():
    """~3/4 of physical VMEM, clamped per generation (v7x has 64 MiB/TC)."""
    limit = None
    try:
        limit = int(pltpu.get_tpu_info().vmem_capacity_bytes) * 3 // 4
    except Exception:
        limit = None
    if limit is None:
        if _IS_V7:
            limit = 48 * 1024 * 1024
        elif _IS_V5 or _IS_V6:
            limit = 96 * 1024 * 1024
        else:
            limit = 64 * 1024 * 1024
    cap = 48 * 1024 * 1024 if _IS_V7 else 96 * 1024 * 1024
    return min(limit, cap)


_VMEM_LIMIT = _default_vmem_limit()

# Token-dim tile preference: arithmetic intensity over the streamed weight
# block equals tm FLOP/byte, so tm must clear the per-generation ridge
# (v6e ~680, v7x ~310, v5e ~240 FLOP/byte).
if _IS_V6:
    _TM_PREF = 1024
elif _IS_V7:
    _TM_PREF = 512          # keep total tiles modest: only 64 MiB VMEM per TC
else:
    _TM_PREF = 256          # v5e (and unknown): ridge ~240
_TI_PREF = 512              # FFN intermediate reduction chunk (lane-aligned)

# bf16 exp on v6e/v7x (bf16 EUP); f32 on v5e / unknown.
_EXP_DTYPE = jnp.bfloat16 if (_IS_V6 or _IS_V7) else jnp.float32
# tanh-approx GELU on v5e (goes to the otherwise-idle EUP); exact erf elsewhere.
_GELU_TANH = _IS_V5


def _pick_tile(dim, pref, align):
    """Largest tile <= pref that divides `dim` and is `align`-aligned.

    Never silently blows up to a huge full-dim block: the full dim is used
    only when dim <= pref, or when no aligned divisor exists (then a
    full-extent block is the only legal choice).
    """
    if dim <= pref:
        return dim
    t = (pref // align) * align
    while t >= align:
        if dim % t == 0:
            return t
        t -= align
    return dim


def _gelu(x):
    if _GELU_TANH:
        # v5e: tanh-approximate GELU (EUP), frees the VALU between FFN matmuls.
        c = math.sqrt(2.0 / math.pi)
        return 0.5 * x * (1.0 + jnp.tanh(c * (x + 0.044715 * x * x * x)))
    # exact (erf-based) GELU — matches HF BERT.
    return 0.5 * x * (1.0 + jax.lax.erf(x * (1.0 / math.sqrt(2.0))))


# ------------- fused attention block: QKV -> MHA -> Wo -> +res -> LN ---------

def _attn_block_kernel(x_ref, wqkv_ref, bqkv_ref, wo_ref, bo_ref, g_ref, bt_ref,
                       mask_ref, o_ref, *, num_heads, head_dim, scale, eps):
    H = num_heads * head_dim
    x = x_ref[0]                                                # (S, H) bf16
    S = x.shape[0]

    # Fused QKV projection (no HBM roundtrip for the (S, 3H) slab).
    qkv = (jnp.dot(x, wqkv_ref[...], preferred_element_type=jnp.float32)
           + bqkv_ref[...].astype(jnp.float32)).astype(x.dtype)  # (S, 3H) bf16

    bias = mask_ref[0].astype(jnp.float32)                      # (1, S)
    wo = wo_ref[...]                                            # (H, H) bf16

    # Per-head attention; each head's context is consumed immediately by the
    # output projection (acc += ctx_h @ Wo[h]) — no (S,H) concat, no HBM.
    acc = jnp.zeros((S, H), jnp.float32)
    for h in range(num_heads):                                  # static loop
        q = qkv[:, h * head_dim:(h + 1) * head_dim]
        k = qkv[:, H + h * head_dim:H + (h + 1) * head_dim]
        v = qkv[:, 2 * H + h * head_dim:2 * H + (h + 1) * head_dim]
        # contract last dims -> no explicit k.T / XLU transpose.
        scores = jax.lax.dot_general(
            q, k, (((1,), (1,)), ((), ())),
            preferred_element_type=jnp.float32) * scale          # (S, S) f32
        scores = scores + bias
        scores = scores - jnp.max(scores, axis=-1, keepdims=True)
        p = jnp.exp(scores.astype(_EXP_DTYPE))                   # bf16 EUP on v6e/v7x
        denom = jnp.sum(p.astype(jnp.float32), axis=-1, keepdims=True)
        ctx = jnp.dot(p.astype(v.dtype), v,
                      preferred_element_type=jnp.float32)        # (S, hd) f32
        ctx = ctx * pl.reciprocal(denom, approx=True)            # fold softmax div
        acc += jnp.dot(ctx.astype(wo.dtype),
                       wo[h * head_dim:(h + 1) * head_dim, :],
                       preferred_element_type=jnp.float32)

    # Output-projection bias + residual + LayerNorm epilogue (f32).
    y = acc + bo_ref[...].astype(jnp.float32) + x.astype(jnp.float32)
    mean = jnp.mean(y, axis=-1, keepdims=True)
    var = jnp.mean((y - mean) ** 2, axis=-1, keepdims=True)
    yn = (y - mean) * jax.lax.rsqrt(var + eps)
    o_ref[0] = (yn * g_ref[...].astype(jnp.float32)
                + bt_ref[...].astype(jnp.float32)).astype(o_ref.dtype)


def attention_block(x, mask_bias, wqkv, bqkv, wo, bo, gamma, beta, num_heads,
                    eps=1e-12):
    """LayerNorm(x + MHA(x) @ Wo + bo), fully fused; one grid step per batch row."""
    B, S, H = x.shape
    head_dim = H // num_heads
    scale = 1.0 / math.sqrt(head_dim)
    three_h = 3 * H
    # TODO(synk): for long sequences flash-tile over KV blocks, and for B==1 on
    # v7x split the head dim onto a second parallel grid axis; at these shapes
    # the full (S,S) scores fit comfortably in VMEM and B rows feed both TCs.
    return pl.pallas_call(
        functools.partial(_attn_block_kernel, num_heads=num_heads,
                          head_dim=head_dim, scale=scale, eps=eps),
        out_shape=jax.ShapeDtypeStruct((B, S, H), x.dtype),
        grid=(B,),
        in_specs=[
            pl.BlockSpec((1, S, H), lambda b: (b, 0, 0)),
            pl.BlockSpec((H, three_h), lambda b: (0, 0)),     # resident weights
            pl.BlockSpec((1, three_h), lambda b: (0, 0)),
            pl.BlockSpec((H, H), lambda b: (0, 0)),
            pl.BlockSpec((1, H), lambda b: (0, 0)),
            pl.BlockSpec((1, H), lambda b: (0, 0)),
            pl.BlockSpec((1, H), lambda b: (0, 0)),
            pl.BlockSpec((1, 1, S), lambda b: (b, 0, 0)),
        ],
        out_specs=pl.BlockSpec((1, S, H), lambda b: (b, 0, 0)),
        compiler_params=pltpu.CompilerParams(
            dimension_semantics=("parallel",),
            vmem_limit_bytes=_VMEM_LIMIT),
    )(x, wqkv, bqkv.reshape(1, three_h), wo, bo.reshape(1, H),
      gamma.reshape(1, H), beta.reshape(1, H), mask_bias)


# ---------------- fused FFN: GELU(x@W1+b1)@W2 + b2, +res, LN -----------------

def _ffn_kernel(x_ref, w1_ref, b1_ref, w2_ref, b2_ref, g_ref, bt_ref,
                o_ref, acc_ref, *, eps):
    @pl.when(pl.program_id(1) == 0)
    def _():
        acc_ref[...] = jnp.zeros_like(acc_ref)

    h1 = (jnp.dot(x_ref[...], w1_ref[...], preferred_element_type=jnp.float32)
          + b1_ref[...].astype(jnp.float32))
    h1 = _gelu(h1)
    acc_ref[...] += jnp.dot(h1.astype(x_ref.dtype), w2_ref[...],
                            preferred_element_type=jnp.float32)

    @pl.when(pl.program_id(1) == pl.num_programs(1) - 1)
    def _():
        # residual is the FFN input itself (x block is k-invariant).
        y = (acc_ref[...] + b2_ref[...].astype(jnp.float32)
             + x_ref[...].astype(jnp.float32))
        mean = jnp.mean(y, axis=-1, keepdims=True)
        var = jnp.mean((y - mean) ** 2, axis=-1, keepdims=True)
        yn = (y - mean) * jax.lax.rsqrt(var + eps)
        o_ref[...] = (yn * g_ref[...].astype(jnp.float32)
                      + bt_ref[...].astype(jnp.float32)).astype(o_ref.dtype)


def ffn_residual_layernorm(x, w1, b1, w2, b2, gamma, beta, eps=1e-12):
    """LayerNorm(x + GELU(x@W1+b1)@W2 + b2); intermediate never hits HBM."""
    M, H = x.shape
    I = w1.shape[1]
    tm = _pick_tile(M, _TM_PREF, 8)
    ti = _pick_tile(I, _TI_PREF, 128)
    # TODO(synk): on v7x try pipeline_mode=pl.Buffered(3) on the W1/W2 specs if
    # bundle dumps still show exposed weight DMA.
    return pl.pallas_call(
        functools.partial(_ffn_kernel, eps=eps),
        out_shape=jax.ShapeDtypeStruct((M, H), x.dtype),
        grid=(M // tm, I // ti),
        in_specs=[
            pl.BlockSpec((tm, H), lambda i, k: (i, 0)),
            pl.BlockSpec((H, ti), lambda i, k: (0, k)),
            pl.BlockSpec((1, ti), lambda i, k: (0, k)),
            pl.BlockSpec((ti, H), lambda i, k: (k, 0)),
            pl.BlockSpec((1, H), lambda i, k: (0, 0)),
            pl.BlockSpec((1, H), lambda i, k: (0, 0)),
            pl.BlockSpec((1, H), lambda i, k: (0, 0)),
        ],
        out_specs=pl.BlockSpec((tm, H), lambda i, k: (i, 0)),
        scratch_shapes=[pltpu.VMEM((tm, H), jnp.float32)],
        compiler_params=pltpu.CompilerParams(
            dimension_semantics=("parallel", "arbitrary"),
            vmem_limit_bytes=_VMEM_LIMIT),
    )(x, w1, b1.reshape(1, I), w2, b2.reshape(1, H),
      gamma.reshape(1, H), beta.reshape(1, H))


# ------------------------------ layernorm ------------------------------------

def _layernorm_kernel(x_ref, g_ref, b_ref, o_ref, *, eps):
    x = x_ref[...].astype(jnp.float32)
    mean = jnp.mean(x, axis=-1, keepdims=True)
    var = jnp.mean((x - mean) ** 2, axis=-1, keepdims=True)
    y = (x - mean) * jax.lax.rsqrt(var + eps)
    o_ref[...] = (y * g_ref[...].astype(jnp.float32)
                  + b_ref[...].astype(jnp.float32)).astype(o_ref.dtype)


def layernorm(x, gamma, beta, eps=1e-12, out_dtype=None):
    M, H = x.shape
    out_dtype = out_dtype or x.dtype
    tm = _pick_tile(M, _TM_PREF, 8)
    return pl.pallas_call(
        functools.partial(_layernorm_kernel, eps=eps),
        out_shape=jax.ShapeDtypeStruct((M, H), out_dtype),
        grid=(M // tm,),
        in_specs=[
            pl.BlockSpec((tm, H), lambda i: (i, 0)),
            pl.BlockSpec((1, H), lambda i: (0, 0)),
            pl.BlockSpec((1, H), lambda i: (0, 0)),
        ],
        out_specs=pl.BlockSpec((tm, H), lambda i: (i, 0)),
        compiler_params=pltpu.CompilerParams(
            dimension_semantics=("parallel",),
            vmem_limit_bytes=_VMEM_LIMIT),
    )(x, gamma.reshape(1, H), beta.reshape(1, H))


# ------------------------------ model config ---------------------------------

class Config:
    vocab_size = 100
    hidden = 128            # lane-dense small config (bert-base would be 768)
    num_heads = 2           # head_dim = 64
    num_layers = 2
    intermediate = 512
    max_pos = 16
    type_vocab = 2
    num_labels = 3


def init_params(key, cfg):
    # Deterministic synthetic init with identical forward semantics to HF BERT.
    keys = iter(jax.random.split(key, 64))

    def normal(shape, dtype=jnp.bfloat16):
        return (0.02 * jax.random.normal(next(keys), shape,
                                         dtype=jnp.float32)).astype(dtype)

    H, I, I3 = cfg.hidden, cfg.intermediate, 3 * cfg.hidden
    params = {
        "word_emb": normal((cfg.vocab_size, H), jnp.float32),
        "pos_emb": normal((cfg.max_pos, H), jnp.float32),
        "type_emb": normal((cfg.type_vocab, H), jnp.float32),
        "emb_ln_g": jnp.ones((H,), jnp.float32),
        "emb_ln_b": jnp.zeros((H,), jnp.float32),
        "layers": [],
        "cls_w": normal((H, cfg.num_labels), jnp.float32),
        "cls_b": jnp.zeros((cfg.num_labels,), jnp.float32),
    }
    for _ in range(cfg.num_layers):
        params["layers"].append({
            "qkv_w": normal((H, I3)),                       # fused Q|K|V
            "qkv_b": jnp.zeros((I3,), jnp.float32),
            "o_w": normal((H, H)),
            "o_b": jnp.zeros((H,), jnp.float32),
            "ln1_g": jnp.ones((H,), jnp.float32),
            "ln1_b": jnp.zeros((H,), jnp.float32),
            "ff1_w": normal((H, I)),
            "ff1_b": jnp.zeros((I,), jnp.float32),
            "ff2_w": normal((I, H)),
            "ff2_b": jnp.zeros((H,), jnp.float32),
            "ln2_g": jnp.ones((H,), jnp.float32),
            "ln2_b": jnp.zeros((H,), jnp.float32),
        })
    return params


# ------------------------------ forward pass ---------------------------------

def bert_classifier_forward(params, input_ids, attention_mask, cfg):
    B, S = input_ids.shape
    H = cfg.hidden

    # Embeddings: gathers are plain-JAX glue; LayerNorm is a Pallas kernel.
    # TODO(synk): token_type_ids are assumed all-zero (type_emb[0]).
    emb = (jnp.take(params["word_emb"], input_ids, axis=0)
           + params["pos_emb"][:S][None, :, :]
           + params["type_emb"][0][None, None, :])
    h = layernorm(emb.reshape(B * S, H).astype(ACT_DTYPE),
                  params["emb_ln_g"], params["emb_ln_b"], out_dtype=ACT_DTYPE)

    # HF BERT extended additive mask, precomputed once (hoisted out of kernels).
    mask_bias = ((1.0 - attention_mask.astype(jnp.float32))
                 * -10000.0).reshape(B, 1, S)

    for lyr in params["layers"]:
        # Fully fused attention block: QKV proj + MHA + Wo + residual + LN.
        h = attention_block(h.reshape(B, S, H), mask_bias,
                            lyr["qkv_w"], lyr["qkv_b"], lyr["o_w"], lyr["o_b"],
                            lyr["ln1_g"], lyr["ln1_b"],
                            cfg.num_heads).reshape(B * S, H)
        h = ffn_residual_layernorm(h, lyr["ff1_w"], lyr["ff1_b"],
                                   lyr["ff2_w"], lyr["ff2_b"],
                                   lyr["ln2_g"], lyr["ln2_b"])

    cls_output = h.reshape(B, S, H)[:, 0, :]     # last_hidden_state[:, 0, :]
    # TODO(synk): nn.Dropout(p=0.3) is identity at inference; no mask applied.
    # Classifier head in plain JAX: a pallas_call launch is pure overhead for a
    # (B,H)x(H,num_labels) matmul (perf review).
    logits = cls_output.astype(jnp.float32) @ params["cls_w"] + params["cls_b"]
    return logits


# ---------------------------------- main -------------------------------------

if __name__ == "__main__":
    cfg = Config()
    key = jax.random.PRNGKey(0)
    pkey, ikey = jax.random.split(key)
    params = init_params(pkey, cfg)

    B, S = 2, 8
    input_ids = jax.random.randint(ikey, (B, S), 0, cfg.vocab_size,
                                   dtype=jnp.int32)
    attention_mask = jnp.array([[1, 1, 1, 1, 1, 1, 0, 0],
                                [1, 1, 1, 1, 1, 1, 1, 1]], dtype=jnp.int32)

    logits = bert_classifier_forward(params, input_ids, attention_mask, cfg)
    logits = jax.block_until_ready(logits)
    assert logits.shape == (B, cfg.num_labels)
    assert bool(jnp.all(jnp.isfinite(logits)))
    print("KERNEL_OK")
</pallas_src>

<mosaic_0001>
module attributes {stable_mosaic.version = 11 : i64} {
  func.func @_layernorm_kernel(%arg0: i32, %arg1: memref<16x128xbf16, #tpu.memory_space<vmem>>, %arg2: memref<1x128xf32, #tpu.memory_space<vmem>>, %arg3: memref<1x128xf32, #tpu.memory_space<vmem>>, %arg4: memref<16x128xbf16, #tpu.memory_space<vmem>>) attributes {dimension_semantics = [#tpu.dimension_semantics<parallel>], iteration_bounds = array<i64: 1>, scalar_prefetch = 0 : i64, scratch_operands = 0 : i64, tpu.core_type = #tpu.core_type<tc>, window_params = [{transform_indices = @transform_0, window_bounds = array<i64: 16, 128>}, {pipeline_mode = #tpu.pipeline_mode<synchronous>, transform_indices = @transform_1, window_bounds = array<i64: 1, 128>}, {pipeline_mode = #tpu.pipeline_mode<synchronous>, transform_indices = @transform_2, window_bounds = array<i64: 1, 128>}, {transform_indices = @transform_3, window_bounds = array<i64: 16, 128>}]} {
    %c0 = arith.constant 0 : index
    %c0_0 = arith.constant 0 : index
    %0 = vector.load %arg1[%c0, %c0_0] : memref<16x128xbf16, #tpu.memory_space<vmem>>, vector<16x128xbf16>
    %1 = arith.extf %0 : vector<16x128xbf16> to vector<16x128xf32>
    %cst = arith.constant dense<0.000000e+00> : vector<16xf32>
    %2 = vector.multi_reduction <add>, %1, %cst [1] : vector<16x128xf32> to vector<16xf32>
    %3 = vector.shape_cast %2 : vector<16xf32> to vector<16x1xf32>
    %cst_1 = arith.constant 1.280000e+02 : f32
    %4 = vector.broadcast %cst_1 : f32 to vector<16x1xf32>
    %5 = arith.divf %3, %4 : vector<16x1xf32>
    %6 = vector.broadcast %5 : vector<16x1xf32> to vector<16x128xf32>
    %7 = arith.subf %1, %6 : vector<16x128xf32>
    %8 = arith.mulf %7, %7 : vector<16x128xf32>
    %cst_2 = arith.constant dense<0.000000e+00> : vector<16xf32>
    %9 = vector.multi_reduction <add>, %8, %cst_2 [1] : vector<16x128xf32> to vector<16xf32>
    %10 = vector.shape_cast %9 : vector<16xf32> to vector<16x1xf32>
    %cst_3 = arith.constant 1.280000e+02 : f32
    %11 = vector.broadcast %cst_3 : f32 to vector<16x1xf32>
    %12 = arith.divf %10, %11 : vector<16x1xf32>
    %13 = vector.broadcast %5 : vector<16x1xf32> to vector<16x128xf32>
    %14 = arith.subf %1, %13 : vector<16x128xf32>
    %cst_4 = arith.constant 9.99999996E-13 : f32
    %15 = vector.broadcast %cst_4 : f32 to vector<16x1xf32>
    %16 = arith.addf %12, %15 : vector<16x1xf32>
    %17 = math.rsqrt %16 : vector<16x1xf32>
    %18 = vector.broadcast %17 : vector<16x1xf32> to vector<16x128xf32>
    %19 = arith.mulf %14, %18 : vector<16x128xf32>
    %c0_5 = arith.constant 0 : index
    %c0_6 = arith.constant 0 : index
    %20 = vector.load %arg2[%c0_5, %c0_6] : memref<1x128xf32, #tpu.memory_space<vmem>>, vector<1x128xf32>
    %21 = vector.broadcast %20 : vector<1x128xf32> to vector<16x128xf32>
    %22 = arith.mulf %19, %21 : vector<16x128xf32>
    %c0_7 = arith.constant 0 : index
    %c0_8 = arith.constant 0 : index
    %23 = vector.load %arg3[%c0_7, %c0_8] : memref<1x128xf32, #tpu.memory_space<vmem>>, vector<1x128xf32>
    %24 = vector.broadcast %23 : vector<1x128xf32> to vector<16x128xf32>
    %25 = arith.addf %22, %24 : vector<16x128xf32>
    %26 = arith.truncf %25 : vector<16x128xf32> to vector<16x128xbf16>
    %c0_9 = arith.constant 0 : index
    %c0_10 = arith.constant 0 : index
    %27 = vector.load %arg4[%c0_9, %c0_10] : memref<16x128xbf16, #tpu.memory_space<vmem>>, vector<16x128xbf16>
    tpu.vector_store %arg4[%c0_9, %c0_10], %26 {strides = array<i32>} : memref<16x128xbf16, #tpu.memory_space<vmem>>, vector<16x128xbf16>,
    return
  }
  func.func @transform_0(%arg0: i32) -> (i32, i32) {
    %c0_i32 = arith.constant 0 : i32
    %c0_i32_0 = arith.constant 0 : i32
    return %arg0, %c0_i32 : i32, i32
  }
  func.func @transform_1(%arg0: i32) -> (i32, i32) {
    %c0_i32 = arith.constant 0 : i32
    %c0_i32_0 = arith.constant 0 : i32
    %c0_i32_1 = arith.constant 0 : i32
    return %c0_i32, %c0_i32_0 : i32, i32
  }
  func.func @transform_2(%arg0: i32) -> (i32, i32) {
    %c0_i32 = arith.constant 0 : i32
    %c0_i32_0 = arith.constant 0 : i32
    %c0_i32_1 = arith.constant 0 : i32
    return %c0_i32, %c0_i32_0 : i32, i32
  }
  func.func @transform_3(%arg0: i32) -> (i32, i32) {
    %c0_i32 = arith.constant 0 : i32
    %c0_i32_0 = arith.constant 0 : i32
    return %arg0, %c0_i32 : i32, i32
  }
}

</mosaic_0001>

<llo_original>
// kernel: tpu_custom_call.1
$region0: #{tpu_custom_call.1}
  #allocation0 [shape = 'u32[]', space=smem, size = 0x4, offset = 0x4, fixed_abs, tag = 'smem constant byte address 0x4 - core index']
  #allocation1 [shape = 'u32[144,128]{1,0:T(1,128)}', space=vmem, size = 0x12000, scoped, tag = 'internal scratch']
  %s0 = inlined_call_operand.hbm [shape: bf16[16,128], index: 0, kind: input, shape index: {}]
  %s1 = inlined_call_operand.hbm [shape: f32[1,128], index: 1, kind: input, shape index: {}]
  %s2 = inlined_call_operand.hbm [shape: f32[1,128], index: 2, kind: input, shape index: {}]
  %s3 = inlined_call_operand.hbm [shape: bf16[16,128], index: 3, kind: output, shape index: {}]
  %s4 = sld [smem:[#allocation0]]
  $region34: #{tpu_custom_call.1} parent=0
    _
  %s6 = ssub.s32 1, %s4
  %s7 = scalar_select 0, %s6, %s4
  $region1: #{tpu_custom_call.1} parent=0
    #allocation2 [shape = 'u8[4096]{0}', space=vmem, size = 0x1000, scoped, tag = 'input window, operand 0, single buffered']
    #allocation3 [shape = 's32[1]{0}', space=sflag, size = 0x4, scoped, tag = 'scoped memory for tpu_custom_call.1']
    #allocation4 [shape = 's32[1]{0}', space=sflag, size = 0x4, scoped, tag = 'scoped memory for tpu_custom_call.1']
    #allocation5 [shape = 'u8[512]{0}', space=vmem, size = 0x400, scoped, tag = 'input window, operand 1, single buffered']
    #allocation6 [shape = 's32[1]{0}', space=sflag, size = 0x4, scoped, tag = 'scoped memory for tpu_custom_call.1']
    #allocation7 [shape = 'u8[512]{0}', space=vmem, size = 0x400, scoped, tag = 'input window, operand 2, single buffered']
    #allocation8 [shape = 'u8[4096]{0}', space=vmem, size = 0x1000, scoped, tag = 'output window, operand 0, single buffered']
    %8 = vsyncpa [#allocation3], 0
    %9 = vsyncpa [#allocation6], 0
    %10 = vsyncpa [#allocation4], 0
    // Predicated region
    $region2: #{tpu_custom_call.1} parent=1 // pred_check
      _
    $region3: #{tpu_custom_call.1} parent=1 // pred_check_branch
      %12 = sbr.rel (0) target = $region5
    $region4: #{tpu_custom_call.1} parent=1 // pred_region
      %s14 = ssub.s32 128, 128
      %15 = vsyncadd [#allocation3], %s14
      %s16 = sshll.u32 [#allocation2], 4
      %s17 = int_to_ptr.vmem [resolvable:$true] %s16
      %22 = dma.hbm_to_vmem [thread:$0]  %s0, 128, %s17, [#allocation3], 64, 64, 4
    $region5: #{tpu_custom_call.1} parent=1 // pred_fallthru
      _
    // Predicated region
    $region6: #{tpu_custom_call.1} parent=1 // pred_check
      _
    $region7: #{tpu_custom_call.1} parent=1 // pred_check_branch
      %24 = sbr.rel (0) target = $region9
    $region8: #{tpu_custom_call.1} parent=1 // pred_region
      %s26 = ssub.s32 16, 16
      %27 = vsyncadd [#allocation6], %s26
      %s29 = sshll.u32 [#allocation5], 4
      %s30 = int_to_ptr.vmem [resolvable:$true] %s29
      %32 = dma.hbm_to_vmem [thread:$0]  %s1, 16, %s30, [#allocation6]
    $region9: #{tpu_custom_call.1} parent=1 // pred_fallthru
      _
    // Predicated region
    $region10: #{tpu_custom_call.1} parent=1 // pred_check
      _
    $region11: #{tpu_custom_call.1} parent=1 // pred_check_branch
      %34 = sbr.rel (0) target = $region13
    $region12: #{tpu_custom_call.1} parent=1 // pred_region
      %s36 = ssub.s32 16, 16
      %37 = vsyncadd [#allocation6], %s36
      %s39 = sshll.u32 [#allocation7], 4
      %s40 = int_to_ptr.vmem [resolvable:$true] %s39
      %42 = dma.hbm_to_vmem [thread:$0]  %s2, 16, %s40, [#allocation6]
    $region13: #{tpu_custom_call.1} parent=1 // pred_fallthru
      _
    // Predicated region
    $region14: #{tpu_custom_call.1} parent=1 // pred_check
      _
    $region15: #{tpu_custom_call.1} parent=1 // pred_check_branch
      %44 = sbr.rel (0) target = $region17
    $region16: #{tpu_custom_call.1} parent=1 // pred_region
      %45 = dma.done [#allocation3], 128
    $region17: #{tpu_custom_call.1} parent=1 // pred_fallthru
      _
    // Predicated region
    $region18: #{tpu_custom_call.1} parent=1 // pred_check
      _
    $region19: #{tpu_custom_call.1} parent=1 // pred_check_branch
      %47 = sbr.rel (0) target = $region21
    $region20: #{tpu_custom_call.1} parent=1 // pred_region
      %48 = dma.done [#allocation6], 16
    $region21: #{tpu_custom_call.1} parent=1 // pred_fallthru
      _
    // Predicated region
    $region22: #{tpu_custom_call.1} parent=1 // pred_check
      _
    $region23: #{tpu_custom_call.1} parent=1 // pred_check_branch
      %50 = sbr.rel (0) target = $region25
    $region24: #{tpu_custom_call.1} parent=1 // pred_region
      %51 = dma.done [#allocation6], 16
    $region25: #{tpu_custom_call.1} parent=1 // pred_fallthru
      _
    %v52 = vld [vmem:[#allocation2] sm:$0xf]
    %v53 = vld [vmem:[#allocation2 + $0x4] sm:$0xf]
    %v54 = vunpack.c.l.bf16 %v52
    %v55 = vunpack.c.l.bf16 %v53
    %56 = vadd.xlane.f32.xlu0 %v54
    %v57 = vpop.xlane.xlu0 %56
    %58 = vadd.xlane.f32.xlu0 %v55
    %v59 = vpop.xlane.xlu0 %58
    %v60 = vrcp.pop 128.0
    %v61 = vmul.f32 %v57, %v60
    %v62 = vmul.f32 %v59, %v60
    %v63 = vsub.f32 %v54, %v61
    %v64 = vsub.f32 %v55, %v62
    %v65 = vmul.f32 %v63, %v63
    %v66 = vmul.f32 %v64, %v64
    %67 = vadd.xlane.f32.xlu0 %v65
    %v68 = vpop.xlane.xlu0 %67
    %69 = vadd.xlane.f32.xlu0 %v66
    %v70 = vpop.xlane.xlu0 %69
    %v71 = vmul.f32 %v68, %v60
    %v72 = vmul.f32 %v70, %v60
    %v73 = vadd.f32 %v71, 1e-12
    %v74 = vadd.f32 %v72, 1e-12
    %v75 = vrsqrt.pop %v73
    %v76 = vrsqrt.pop %v74
    %v77 = vmul.f32 %v63, %v75
    %v78 = vmul.f32 %v64, %v76
    %v79 = vld [vmem:[#allocation5] sm:$0x1]
    %v81 = vlaneseq
    %v82 = vshrl.u32 %v81, 7
    %v83 = vsub.s32 0, %v82
    %v84 = vrot.slane %v79, %v83
    %v86 = vmul.f32 %v77, %v84
    %v87 = vmul.f32 %v78, %v84
    %v88 = vld [vmem:[#allocation7] sm:$0x1]
    %v90 = vlaneseq
    %v91 = vshrl.u32 %v90, 7
    %v92 = vsub.s32 0, %v91
    %v93 = vrot.slane %v88, %v92
    %v95 = vadd.f32 %v86, %v93
    %v96 = vadd.f32 %v87, %v93
    %v97 = vpack.c.bf16 %v96, %v95
    %v99 = vunpack.c.l.b16 %v97
    %v100 = vunpack.c.h.b16 %v97
    %v101 = vpack.c.b16 %v99, %v99
    %v102 = vpack.c.b16 %v100, %v100
    %105 = vst [vmem:[#allocation8] sm:$0xf] %v101
    %106 = vst [vmem:[#allocation8 + $0x4] sm:$0xf] %v102
    // Predicated region
    $region26: #{tpu_custom_call.1} parent=1 // pred_check
      _
    $region27: #{tpu_custom_call.1} parent=1 // pred_check_branch
      %108 = sbr.rel (0) target = $region29
    $region28: #{tpu_custom_call.1} parent=1 // pred_region
      %s110 = ssub.s32 128, 128
      %111 = vsyncadd [#allocation4], %s110
      %s112 = sshll.u32 [#allocation8], 4
      %s113 = int_to_ptr.vmem [resolvable:$true] %s112
      %118 = dma.vmem_to_hbm [thread:$0]  %s113, 128, %s3, [#allocation4], 64, 64, 4
    $region29: #{tpu_custom_call.1} parent=1 // pred_fallthru
      _
    // Predicated region
    $region30: #{tpu_custom_call.1} parent=1 // pred_check
      _
    $region31: #{tpu_custom_call.1} parent=1 // pred_check_branch
      %120 = sbr.rel (0) target = $region33
    $region32: #{tpu_custom_call.1} parent=1 // pred_region
      %121 = dma.done [#allocation4], 128
    $region33: #{tpu_custom_call.1} parent=1 // pred_fallthru
      _
    %122 = vsyncpa [#allocation3], 1
    %123 = vsyncpa [#allocation6], 1
    %124 = vsyncpa [#allocation4], 1

</llo_original>
